<compile_context>
chip_gen: v6e
topology: v6e:2x2x1
jax: 0.10.0
libtpu: 0.0.40
codegen_flags: <defaults>
</compile_context>

<pallas_src>
import jax
import jax.numpy as jnp
from jax import lax
from jax.experimental import pallas as pl
from jax.experimental.pallas import tpu as pltpu

F32 = jnp.float32
BF16 = jnp.bfloat16


# ----------------------------------------------------------------------------
# Pallas kernels
# ----------------------------------------------------------------------------

def _emb_hwy_kernel(x_ref, pw_ref, w0_ref, b0_ref, w1_ref, b1_ref, o_ref):
    # Fused Linear(E->H, no bias) + 2 highway layers; each highway layer is a
    # single matmul against the fused [Wg | Wt] (H, 2H) weight.
    H = o_ref.shape[-1]
    x = x_ref[...]
    h = jnp.dot(x.astype(BF16), pw_ref[...], preferred_element_type=F32)
    for w_ref, b_ref in ((w0_ref, b0_ref), (w1_ref, b1_ref)):
        gt = (jnp.dot(h.astype(BF16), w_ref[...], preferred_element_type=F32)
              + b_ref[...])
        g = jax.nn.sigmoid(gt[:, 0:H])
        t = jax.nn.relu(gt[:, H:2 * H])
        h = g * t + (1.0 - g) * h
    o_ref[...] = h


def _conv_gap_kernel(x_ref, w_ref, b_ref, o_ref):
    # 3x3 SAME conv as 9 shifted, accumulated matmuls over the padded NHWC
    # image (read once, no im2col blow-up), fused bias + ReLU + global
    # average pool.  Grid over images ("parallel").
    Hp, Wp, C = x_ref.shape[1], x_ref.shape[2], x_ref.shape[3]
    Hh, Ww = Hp - 2, Wp - 2
    cout = w_ref.shape[-1]
    x = x_ref[0]                                    # (Hp, Wp, C)
    acc = jnp.zeros((Hh * Ww, cout), F32)
    k = 0
    for dy in range(3):
        for dx in range(3):
            patch = x[dy:dy + Hh, dx:dx + Ww, :].reshape(Hh * Ww, C)
            acc = acc + jnp.dot(patch.astype(BF16), w_ref[k],
                                preferred_element_type=F32)
            k += 1
    act = jax.nn.relu(acc + b_ref[...])
    o_ref[0] = jnp.mean(act, axis=0, keepdims=True)


def _bilstm_kernel(x_ref, wih_ref, whh_ref, b_ref, out_ref, hn_ref, xg_ref):
    # One LSTM direction per grid step (grid=(2,), "parallel").
    # x_ref: (T, B, D) time-major; out_ref: (T, B, H) for this direction.
    T, B, D = x_ref.shape
    H = hn_ref.shape[-1]
    is_bwd = pl.program_id(0) == 1
    wih = wih_ref[...]                              # (D, 4H) bf16
    whh = whh_ref[...]                              # (H, 4H) bf16
    bias = b_ref[...]                               # (1, 4H) f32

    # Hoisted input projection: one big (T*B, D) x (D, 4H) GEMM.
    xg_ref[...] = jnp.dot(
        x_ref[...].reshape(T * B, D).astype(BF16), wih,
        preferred_element_type=F32).reshape(T, B, 4 * H)

    def step(t, carry):
        h, c = carry
        tt = jnp.where(is_bwd, T - 1 - t, t)        # in-kernel time reversal
        gates = (xg_ref[tt] + bias
                 + jnp.dot(h.astype(BF16), whh, preferred_element_type=F32))
        i = jax.nn.sigmoid(gates[:, 0:H])
        f = jax.nn.sigmoid(gates[:, H:2 * H])
        g = jnp.tanh(gates[:, 2 * H:3 * H])
        o = jax.nn.sigmoid(gates[:, 3 * H:4 * H])
        c_new = f * c + i * g
        h_new = o * jnp.tanh(c_new)
        out_ref[tt] = h_new                         # per-step store
        return h_new, c_new

    h0 = jnp.zeros((B, H), F32)
    c0 = jnp.zeros((B, H), F32)
    h_last, _ = lax.fori_loop(0, T, step, (h0, c0), unroll=min(T, 8))
    hn_ref[...] = h_last


def _bidaf_kernel(c_ref, q_ref, cmask_ref, qmask_ref,
                  wc_ref, wq_ref, wcq_ref, bias_ref, o_ref):
    # Per-batch BiDAF attention (grid over batch, "parallel").
    c = c_ref[0]          # (Tc, D)
    q = q_ref[0]          # (Tq, D)
    cm = cmask_ref[0] > 0.0    # (Tc, 1) bool
    qm = qmask_ref[0] > 0.0    # (1, Tq) bool
    cb = c.astype(BF16)
    qb = q.astype(BF16)
    s0 = jnp.dot(cb, wc_ref[...], preferred_element_type=F32)        # (Tc,1)
    s1 = jnp.dot(qb, wq_ref[...], preferred_element_type=F32).T      # (1,Tq)
    s2 = lax.dot_general((c * wcq_ref[...]).astype(BF16), qb,
                         (((1,), (1,)), ((), ())),
                         preferred_element_type=F32)                 # (Tc,Tq)
    s = s0 + s1 + s2 + bias_ref[...]
    # TODO(synk): at production Tc/Tq tile over Tc rows and do the axis=0
    #             softmax as a two-pass accumulate (v7x 64 MiB VMEM budget).
    s1m = jax.nn.softmax(jnp.where(qm, s, -1e30), axis=1)
    s2m = jax.nn.softmax(jnp.where(cm, s, -1e30), axis=0)
    s1m_b = s1m.astype(BF16)                                          # cast once
    a = jnp.dot(s1m_b, qb, preferred_element_type=F32)                # (Tc,D)
    ss = lax.dot_general(s1m_b, s2m.astype(BF16),
                         (((1,), (1,)), ((), ())),
                         preferred_element_type=F32)                  # (Tc,Tc)
    b = jnp.dot(ss.astype(BF16), cb, preferred_element_type=F32)      # (Tc,D)
    o_ref[0] = jnp.concatenate([c, a, c * a, c * b], axis=-1)


def _decode_kernel(tgt_ref, emb_ref, mema_ref, memi_ref, h0_ref, dmask_ref,
                   wa_ref, wi_ref, ua_ref, ui_ref, wca_ref, wci_ref,
                   ba_ref, bi_ref, vcat_ref, cwih_ref, cwhh_ref, cb_ref,
                   dists_ref, loss_ref):
    # Entire teacher-forced decode: coverage attention + LSTM cell + NLL and
    # coverage losses.  Target indices live in SMEM; one-hots are built
    # in-kernel, dists are written per step.
    B, Tt, D2 = mema_ref.shape            # D2 = 2H
    H = h0_ref.shape[-1]
    maxlen = dmask_ref.shape[-1]
    n_steps = dists_ref.shape[0]

    def sum2(x):  # (R, C) -> (1, 1)
        return jnp.sum(jnp.sum(x, axis=1, keepdims=True), axis=0, keepdims=True)

    emb_b = emb_ref[...].astype(BF16)     # cast once, reused every step
    mem_a_b = mema_ref[...].astype(BF16)
    mem_i_b = memi_ref[...].astype(BF16)
    dm = dmask_ref[...] > 0.0             # (B, maxlen) bool
    ua, ui = ua_ref[...], ui_ref[...]
    wca, wci = wca_ref[...], wci_ref[...]
    ba, bi = ba_ref[...], bi_ref[...]
    v_cat = vcat_ref[...]                 # (2H, 1) bf16
    cwih, cwhh, cbias = cwih_ref[...], cwhh_ref[...], cb_ref[...]

    # Hoisted memory projections: two wide GEMMs instead of 2*B tiny ones.
    mema_p = jnp.dot(mem_a_b.reshape(B * Tt, D2), wa_ref[...],
                     preferred_element_type=F32).reshape(B, Tt, H)
    memi_p = jnp.dot(mem_i_b.reshape(B * Tt, D2), wi_ref[...],
                     preferred_element_type=F32).reshape(B, Tt, H)

    h = h0_ref[...]
    c = jnp.zeros((B, H), F32)
    dec_in = jnp.zeros((B, emb_ref.shape[-1]), F32)
    cov = jnp.zeros((B, Tt), F32)
    loss = jnp.zeros((1, 1), F32)
    eps = 1e-12
    cov_loss_wt = 1.0
    iota_row = lax.broadcasted_iota(jnp.int32, (1, maxlen), 1)
    bdims = (((2,), (1,)), ((0,), (0,)))  # batched (B,1,K) x (B,K,N)

    # TODO(synk): convert to lax.fori_loop with (h,c,cov,dec_in,loss) carries
    #             once the decoder target length grows large.
    for step in range(n_steps):
        hb = h.astype(BF16)               # single cast, used 3x
        hq_a = jnp.dot(hb, ua, preferred_element_type=F32)
        hq_i = jnp.dot(hb, ui, preferred_element_type=F32)
        cov_e = cov[:, :, None]
        feat_a = jnp.tanh(mema_p + hq_a[:, None, :] + cov_e * wca + ba)
        feat_i = jnp.tanh(memi_p + hq_i[:, None, :] + cov_e * wci + bi)
        feat = jnp.concatenate([feat_a, feat_i], axis=-1)     # (B,Tt,2H)
        scores = jnp.dot(feat.reshape(B * Tt, 2 * H).astype(BF16), v_cat,
                         preferred_element_type=F32).reshape(B, Tt)
        if maxlen > Tt:
            logits = jnp.concatenate(
                [scores, jnp.zeros((B, maxlen - Tt), F32)], axis=1)
        else:
            logits = scores
        dist = jax.nn.softmax(jnp.where(dm, logits, -1e30), axis=1)
        dists_ref[step] = dist            # per-step store (no final stack)

        att = dist[:, 0:Tt]
        # See et al. coverage penalty on the pre-update coverage.
        loss = loss + cov_loss_wt * sum2(jnp.minimum(att, cov))
        cov = cov + att

        att_b = att.astype(BF16)[:, None, :]                  # (B,1,Tt)
        ctx_a = lax.dot_general(att_b, mem_a_b, bdims,
                                preferred_element_type=F32)[:, 0, :]
        ctx_i = lax.dot_general(att_b, mem_i_b, bdims,
                                preferred_element_type=F32)[:, 0, :]

        cell_in = jnp.concatenate([dec_in, ctx_a, ctx_i], axis=1)
        gates = (jnp.dot(cell_in.astype(BF16), cwih,
                         preferred_element_type=F32)
                 + jnp.dot(hb, cwhh, preferred_element_type=F32) + cbias)
        i_g = jax.nn.sigmoid(gates[:, 0:H])
        f_g = jax.nn.sigmoid(gates[:, H:2 * H])
        g_g = jnp.tanh(gates[:, 2 * H:3 * H])
        o_g = jax.nn.sigmoid(gates[:, 3 * H:4 * H])
        c = f_g * c + i_g * g_g
        h = o_g * jnp.tanh(c)

        # One-hot target built from SMEM indices (no dense HBM one-hot).
        oh_s = jnp.concatenate(
            [(iota_row == tgt_ref[step, b]).astype(F32) for b in range(B)],
            axis=0)                                            # (B,maxlen)
        prob = jnp.sum(dist * oh_s, axis=1, keepdims=True)     # (B,1)
        loss = loss + sum2(-jnp.log(prob + eps))
        # TODO(synk): teacher forcing assumes target indices < Tt (the
        #             reference indexes embedded_text directly as well).
        oh_t = oh_s[:, 0:Tt].astype(BF16)[:, None, :]          # (B,1,Tt)
        dec_in = lax.dot_general(oh_t, emb_b, bdims,
                                 preferred_element_type=F32)[:, 0, :]

    loss_ref[...] = loss / n_steps


# ----------------------------------------------------------------------------
# Module wrappers (JAX glue around the kernels)
# ----------------------------------------------------------------------------

def _pick_row_tile(M, target=512):
    if M <= target:
        return M
    rb = target - (target % 8)
    while rb >= 8:
        if M % rb == 0:
            return rb
        rb -= 8
    return M


def embedding_forward(x, p):
    # dropout(p=0) -> Linear(E,H,bias=False) -> Highway x2, fused.
    B, T, E = x.shape
    H = p['proj_w'].shape[1]
    M = B * T
    RB = _pick_row_tile(M)
    hw = p['hwy']

    def wspec(shape):
        return pl.BlockSpec(shape, lambda i: (0, 0))

    out = pl.pallas_call(
        _emb_hwy_kernel,
        out_shape=jax.ShapeDtypeStruct((M, H), F32),
        grid=(M // RB,),
        in_specs=[
            pl.BlockSpec((RB, E), lambda i: (i, 0)),
            wspec((E, H)),
            wspec((H, 2 * H)), wspec((1, 2 * H)),
            wspec((H, 2 * H)), wspec((1, 2 * H)),
        ],
        out_specs=pl.BlockSpec((RB, H), lambda i: (i, 0)),
        compiler_params=pltpu.CompilerParams(
            dimension_semantics=("parallel",)),
    )(x.reshape(M, E), p['proj_w'],
      hw[0]['w'], hw[0]['b'], hw[1]['w'], hw[1]['b'])
    return out.reshape(B, T, H)


def bilstm_layer(x, p):
    B, T, D = x.shape
    H = p['w_hh'].shape[-2]
    x_tm = jnp.transpose(x, (1, 0, 2))                 # time-major (T,B,D)
    out4, hn = pl.pallas_call(
        _bilstm_kernel,
        out_shape=(jax.ShapeDtypeStruct((2, T, B, H), F32),
                   jax.ShapeDtypeStruct((2, B, H), F32)),
        grid=(2,),
        in_specs=[
            pl.BlockSpec((T, B, D), lambda d: (0, 0, 0)),
            pl.BlockSpec((None, D, 4 * H), lambda d: (d, 0, 0)),
            pl.BlockSpec((None, H, 4 * H), lambda d: (d, 0, 0)),
            pl.BlockSpec((None, 1, 4 * H), lambda d: (d, 0, 0)),
        ],
        out_specs=(
            pl.BlockSpec((None, T, B, H), lambda d: (d, 0, 0, 0)),
            pl.BlockSpec((None, B, H), lambda d: (d, 0, 0)),
        ),
        scratch_shapes=[pltpu.VMEM((T, B, 4 * H), F32)],
        compiler_params=pltpu.CompilerParams(
            dimension_semantics=("parallel",)),
    )(x_tm, p['w_ih'], p['w_hh'], p['b'])
    out = jnp.concatenate([out4[0], out4[1]], axis=-1)  # (T,B,2H)
    out = jnp.transpose(out, (1, 0, 2))                 # (B,T,2H)
    h_n = jnp.transpose(hn, (1, 0, 2))                  # (B,2,H)
    return out, h_n


def rnn_encoder(x, layers):
    out = x
    h_all = []
    for p in layers:
        out, h_n = bilstm_layer(out, p)
        h_all.append(h_n)
    return out, jnp.concatenate(h_all, axis=1)          # (B, layers*2, H)


def image_embedding(images, p):
    # NCHW input (like PyTorch); 3x3 SAME conv + ReLU + GAP fused in-kernel.
    N, C, Hh, Ww = images.shape
    x = jnp.transpose(images, (0, 2, 3, 1))             # NHWC
    x = jnp.pad(x, ((0, 0), (1, 1), (1, 1), (0, 0)))
    Hp, Wp = Hh + 2, Ww + 2
    cout = p['conv_w'].shape[-1]
    out = pl.pallas_call(
        _conv_gap_kernel,
        out_shape=jax.ShapeDtypeStruct((N, 1, cout), F32),
        grid=(N,),
        in_specs=[
            pl.BlockSpec((1, Hp, Wp, C), lambda n: (n, 0, 0, 0)),
            pl.BlockSpec((9, C, cout), lambda n: (0, 0, 0)),
            pl.BlockSpec((1, cout), lambda n: (0, 0)),
        ],
        out_specs=pl.BlockSpec((1, 1, cout), lambda n: (n, 0, 0)),
        compiler_params=pltpu.CompilerParams(
            dimension_semantics=("parallel",)),
    )(x, p['conv_w'], p['conv_b'])
    return out.reshape(N, cout)


def bidaf_attention(c, q, c_mask, q_mask, p):
    B, Tc, D = c.shape
    Tq = q.shape[1]
    cm = c_mask.reshape(B, Tc, 1).astype(F32)
    qm = q_mask.reshape(B, 1, Tq).astype(F32)
    return pl.pallas_call(
        _bidaf_kernel,
        out_shape=jax.ShapeDtypeStruct((B, Tc, 4 * D), F32),
        grid=(B,),
        in_specs=[
            pl.BlockSpec((1, Tc, D), lambda b: (b, 0, 0)),
            pl.BlockSpec((1, Tq, D), lambda b: (b, 0, 0)),
            pl.BlockSpec((1, Tc, 1), lambda b: (b, 0, 0)),
            pl.BlockSpec((1, 1, Tq), lambda b: (b, 0, 0)),
            pl.BlockSpec((D, 1), lambda b: (0, 0)),
            pl.BlockSpec((D, 1), lambda b: (0, 0)),
            pl.BlockSpec((1, D), lambda b: (0, 0)),
            pl.BlockSpec((1, 1), lambda b: (0, 0)),
        ],
        out_specs=pl.BlockSpec((1, Tc, 4 * D), lambda b: (b, 0, 0)),
        compiler_params=pltpu.CompilerParams(
            dimension_semantics=("parallel",)),
    )(c, q, cm, qm, p['c_w'], p['q_w'], p['cq_w'], p['bias'])


def fused_decode(emb, mem_a, mem_i, h0, dmask, tgt_idx, dp):
    # tgt_idx: (B, n_steps) int32 target indices (teacher forcing + NLL).
    B = emb.shape[0]
    maxlen = dmask.shape[1]
    n_steps = tgt_idx.shape[1]
    tgt_t = jnp.transpose(tgt_idx, (1, 0)).astype(jnp.int32)  # (n_steps, B)
    smem = pl.BlockSpec(memory_space=pltpu.MemorySpace.SMEM)
    vmem = pl.BlockSpec(memory_space=pltpu.MemorySpace.VMEM)
    # TODO(synk): tile over (B, Tt) for production sequence lengths (v7x VMEM).
    dists_t, loss = pl.pallas_call(
        _decode_kernel,
        out_shape=(jax.ShapeDtypeStruct((n_steps, B, maxlen), F32),
                   jax.ShapeDtypeStruct((1, 1), F32)),
        in_specs=[smem] + [vmem] * 17,
        out_specs=(vmem, vmem),
    )(tgt_t, emb, mem_a, mem_i, h0, dmask,
      dp['wa'], dp['wi'], dp['ua'], dp['ui'], dp['wca'], dp['wci'],
      dp['ba'], dp['bi'], dp['v_cat'],
      dp['cell']['w_ih'], dp['cell']['w_hh'], dp['cell']['b'])
    return jnp.transpose(dists_t, (1, 0, 2)), loss[0, 0]


# ----------------------------------------------------------------------------
# Full MMBiDAF forward (training branch: teacher-forced decode + loss)
# ----------------------------------------------------------------------------

def mmbidaf_forward(params, embedded_text, text_lens, embedded_audio,
                    audio_lens, transformed_images, image_lens,
                    batch_target_indices, max_transcript_length):
    B, Tt, _ = embedded_text.shape
    Ta = embedded_audio.shape[1]
    Tf = transformed_images.shape[1]

    # Embedding + encoding of each modality
    text_emb = embedding_forward(embedded_text, params['emb'])
    text_enc, _ = rnn_encoder(text_emb, params['text_enc'])
    audio_emb = embedding_forward(embedded_audio, params['a_emb'])
    audio_enc, _ = rnn_encoder(audio_emb, params['audio_enc'])

    imgs = transformed_images.reshape((-1,) + transformed_images.shape[2:])
    img_feat = image_embedding(imgs, params['img']).reshape(B, Tf, -1)
    image_emb = embedding_forward(img_feat, params['i_emb'])
    image_enc, _ = rnn_encoder(image_emb, params['image_enc'])

    # Masks
    def make_mask(T, lens):
        return (jnp.arange(T)[None, :] < lens[:, None]).astype(F32)

    text_mask = make_mask(Tt, text_lens)
    audio_mask = make_mask(Ta, audio_lens)
    image_mask = make_mask(Tf, image_lens)
    decoder_mask = jnp.concatenate(
        [text_mask, jnp.zeros((B, max_transcript_length - Tt), F32)], axis=1)

    # BiDAF attention flow (text vs audio / image) -> (B, Tt, 8H)
    ta_att = bidaf_attention(text_enc, audio_enc, text_mask, audio_mask,
                             params['bidaf_a'])
    ti_att = bidaf_attention(text_enc, image_enc, text_mask, image_mask,
                             params['bidaf_i'])

    # Modality-aware encoding (2-layer biLSTM)
    mod_ta, h_ta = rnn_encoder(ta_att, params['mod_t_a'])
    mod_ti, h_ti = rnn_encoder(ti_att, params['mod_t_i'])

    # Fused decoder (coverage attention + LSTM cell + losses, all steps)
    dec_h0 = h_ta.sum(axis=1) + h_ti.sum(axis=1)                 # (B, H)
    out_distributions, loss = fused_decode(
        embedded_text, mod_ta, mod_ti, dec_h0, decoder_mask,
        batch_target_indices, params['decoder'])
    return out_distributions, loss


# ----------------------------------------------------------------------------
# Deterministic parameter init (weights pre-cast to bf16 / pre-fused once)
# ----------------------------------------------------------------------------

_PKEY = jax.random.PRNGKey(0)
_PCOUNT = [0]


def rnd(shape, scale=0.1):
    _PCOUNT[0] += 1
    k = jax.random.fold_in(_PKEY, _PCOUNT[0])
    return scale * jax.random.normal(k, shape, dtype=F32)


def init_embedding(E, H):
    hwy = []
    for _ in range(2):
        wg, wt = rnd((H, H)), rnd((H, H))
        hwy.append({'w': jnp.concatenate([wg, wt], axis=1).astype(BF16),
                    'b': jnp.zeros((1, 2 * H), F32)})
    return {'proj_w': rnd((E, H)).astype(BF16), 'hwy': hwy}


def init_lstm_layer(D, H):
    # Stacked fwd/bwd directions; single combined bias (see TODO at top).
    return {'w_ih': rnd((2, D, 4 * H)).astype(BF16),
            'w_hh': rnd((2, H, 4 * H)).astype(BF16),
            'b': jnp.zeros((2, 1, 4 * H), F32)}


def init_rnn_encoder(D, H, num_layers):
    layers, in_dim = [], D
    for _ in range(num_layers):
        layers.append(init_lstm_layer(in_dim, H))
        in_dim = 2 * H
    return layers


def init_bidaf(D2):
    return {'c_w': rnd((D2, 1)).astype(BF16), 'q_w': rnd((D2, 1)).astype(BF16),
            'cq_w': rnd((1, D2)), 'bias': jnp.zeros((1, 1), F32)}


def init_decoder(Et, H):
    va, vi = rnd((1, H)), rnd((1, H))
    return {'wa': rnd((2 * H, H)).astype(BF16),
            'ua': rnd((H, H)).astype(BF16),
            'wca': rnd((1, H)), 'ba': jnp.zeros((1, H), F32),
            'wi': rnd((2 * H, H)).astype(BF16),
            'ui': rnd((H, H)).astype(BF16),
            'wci': rnd((1, H)), 'bi': jnp.zeros((1, H), F32),
            'v_cat': jnp.concatenate([va.T, vi.T], axis=0).astype(BF16),
            'cell': {'w_ih': rnd((Et + 4 * H, 4 * H)).astype(BF16),
                     'w_hh': rnd((H, 4 * H)).astype(BF16),
                     'b': jnp.zeros((1, 4 * H), F32)}}


def init_image_embedding(E_i, C=3):
    w = rnd((E_i, C, 3, 3))                              # PyTorch conv layout
    w_k = jnp.transpose(w, (2, 3, 1, 0)).reshape(9, C, E_i).astype(BF16)
    return {'conv_w': w_k, 'conv_b': jnp.zeros((1, E_i), F32)}


# ----------------------------------------------------------------------------
# Main
# ----------------------------------------------------------------------------

if __name__ == "__main__":
    B = 2
    H = 16                      # hidden_size
    Tt, Et = 8, 32              # text seq len, text_embedding_size
    Ta, Ea = 8, 16              # audio seq len, audio_embedding_size
    Tf, Ei = 4, 24              # num key-frames, image_embedding_size
    IMG_HW = 8
    MAX_TRANSCRIPT_LEN = 16
    TGT_LEN = 3

    params = {
        'emb': init_embedding(Et, H),
        'a_emb': init_embedding(Ea, H),
        'i_emb': init_embedding(Ei, H),
        'img': init_image_embedding(Ei),
        'text_enc': init_rnn_encoder(H, H, 1),
        'audio_enc': init_rnn_encoder(H, H, 1),
        'image_enc': init_rnn_encoder(H, H, 1),
        'bidaf_a': init_bidaf(2 * H),
        'bidaf_i': init_bidaf(2 * H),
        'mod_t_a': init_rnn_encoder(8 * H, H, 2),
        'mod_t_i': init_rnn_encoder(8 * H, H, 2),
        'decoder': init_decoder(Et, H),
    }

    key = jax.random.PRNGKey(0)
    k1, k2, k3 = jax.random.split(key, 3)
    embedded_text = jax.random.normal(k1, (B, Tt, Et), dtype=F32)
    embedded_audio = jax.random.normal(k2, (B, Ta, Ea), dtype=F32)
    transformed_images = jax.random.normal(
        k3, (B, Tf, 3, IMG_HW, IMG_HW), dtype=F32)   # NCHW like PyTorch
    text_lens = jnp.array([Tt, Tt], dtype=jnp.int32)
    audio_lens = jnp.array([Ta, Ta], dtype=jnp.int32)
    image_lens = jnp.array([Tf, Tf], dtype=jnp.int32)
    batch_target_indices = jnp.array([[1, 3, 5], [0, 2, 7]], dtype=jnp.int32)

    out_distributions, loss = mmbidaf_forward(
        params, embedded_text, text_lens, embedded_audio, audio_lens,
        transformed_images, image_lens, batch_target_indices,
        MAX_TRANSCRIPT_LEN)

    out_distributions = jax.block_until_ready(out_distributions)
    loss = jax.block_until_ready(loss)

    assert out_distributions.shape == (B, TGT_LEN, MAX_TRANSCRIPT_LEN)
    assert bool(jnp.isfinite(loss))
    assert bool(jnp.all(jnp.isfinite(out_distributions)))
    print("KERNEL_OK")
</pallas_src>

<mosaic_0001>
module attributes {stable_mosaic.version = 11 : i64} {
  func.func @_emb_hwy_kernel(%arg0: i32, %arg1: memref<16x32xf32, #tpu.memory_space<vmem>>, %arg2: memref<32x16xbf16, #tpu.memory_space<vmem>>, %arg3: memref<16x32xbf16, #tpu.memory_space<vmem>>, %arg4: memref<1x32xf32, #tpu.memory_space<vmem>>, %arg5: memref<16x32xbf16, #tpu.memory_space<vmem>>, %arg6: memref<1x32xf32, #tpu.memory_space<vmem>>, %arg7: memref<16x16xf32, #tpu.memory_space<vmem>>) attributes {dimension_semantics = [#tpu.dimension_semantics<parallel>], iteration_bounds = array<i64: 1>, scalar_prefetch = 0 : i64, scratch_operands = 0 : i64, tpu.core_type = #tpu.core_type<tc>, window_params = [{transform_indices = @transform_0, window_bounds = array<i64: 16, 32>}, {pipeline_mode = #tpu.pipeline_mode<synchronous>, transform_indices = @transform_1, window_bounds = array<i64: 32, 16>}, {pipeline_mode = #tpu.pipeline_mode<synchronous>, transform_indices = @transform_2, window_bounds = array<i64: 16, 32>}, {pipeline_mode = #tpu.pipeline_mode<synchronous>, transform_indices = @transform_3, window_bounds = array<i64: 1, 32>}, {pipeline_mode = #tpu.pipeline_mode<synchronous>, transform_indices = @transform_4, window_bounds = array<i64: 16, 32>}, {pipeline_mode = #tpu.pipeline_mode<synchronous>, transform_indices = @transform_5, window_bounds = array<i64: 1, 32>}, {transform_indices = @transform_6, window_bounds = array<i64: 16, 16>}]} {
    %c0 = arith.constant 0 : index
    %c0_0 = arith.constant 0 : index
    %0 = vector.load %arg1[%c0, %c0_0] : memref<16x32xf32, #tpu.memory_space<vmem>>, vector<16x32xf32>
    %1 = arith.truncf %0 : vector<16x32xf32> to vector<16x32xbf16>
    %c0_1 = arith.constant 0 : index
    %c0_2 = arith.constant 0 : index
    %2 = vector.load %arg2[%c0_1, %c0_2] : memref<32x16xbf16, #tpu.memory_space<vmem>>, vector<32x16xbf16>
    %cst = arith.constant dense<0.000000e+00> : vector<16x16xf32>
    %3 = tpu.matmul %1, %2, %cst {dimension_numbers = #tpu.dot_dimension_numbers<[1], [0], [0], [1], [0, 0, 1, 1], [], []>} : vector<16x32xbf16>, vector<32x16xbf16>, vector<16x16xf32> -> vector<16x16xf32>
    %4 = arith.truncf %3 : vector<16x16xf32> to vector<16x16xbf16>
    %c0_3 = arith.constant 0 : index
    %c0_4 = arith.constant 0 : index
    %5 = vector.load %arg3[%c0_3, %c0_4] : memref<16x32xbf16, #tpu.memory_space<vmem>>, vector<16x32xbf16>
    %cst_5 = arith.constant dense<0.000000e+00> : vector<16x32xf32>
    %6 = tpu.matmul %4, %5, %cst_5 {dimension_numbers = #tpu.dot_dimension_numbers<[1], [0], [0], [1], [0, 0, 1, 1], [], []>} : vector<16x16xbf16>, vector<16x32xbf16>, vector<16x32xf32> -> vector<16x32xf32>
    %c0_6 = arith.constant 0 : index
    %c0_7 = arith.constant 0 : index
    %7 = vector.load %arg4[%c0_6, %c0_7] : memref<1x32xf32, #tpu.memory_space<vmem>>, vector<1x32xf32>
    %8 = vector.broadcast %7 : vector<1x32xf32> to vector<16x32xf32>
    %9 = arith.addf %6, %8 : vector<16x32xf32>
    %10 = vector.extract_strided_slice %9 {offsets = [0, 0], sizes = [16, 16], strides = [1, 1]} : vector<16x32xf32> to vector<16x16xf32>
    %11 = arith.negf %10 : vector<16x16xf32>
    %12 = math.exp %11 : vector<16x16xf32>
    %cst_8 = arith.constant 1.000000e+00 : f32
    %13 = vector.broadcast %cst_8 : f32 to vector<16x16xf32>
    %14 = arith.addf %13, %12 : vector<16x16xf32>
    %15 = arith.divf %13, %14 : vector<16x16xf32>
    %16 = vector.extract_strided_slice %9 {offsets = [0, 16], sizes = [16, 16], strides = [1, 1]} : vector<16x32xf32> to vector<16x16xf32>
    %cst_9 = arith.constant 0.000000e+00 : f32
    %17 = vector.broadcast %cst_9 : f32 to vector<16x16xf32>
    %18 = arith.maximumf %16, %17 : vector<16x16xf32>
    %19 = arith.mulf %15, %18 : vector<16x16xf32>
    %cst_10 = arith.constant 1.000000e+00 : f32
    %20 = vector.broadcast %cst_10 : f32 to vector<16x16xf32>
    %21 = arith.subf %20, %15 : vector<16x16xf32>
    %22 = arith.mulf %21, %3 : vector<16x16xf32>
    %23 = arith.addf %19, %22 : vector<16x16xf32>
    %24 = arith.truncf %23 : vector<16x16xf32> to vector<16x16xbf16>
    %c0_11 = arith.constant 0 : index
    %c0_12 = arith.constant 0 : index
    %25 = vector.load %arg5[%c0_11, %c0_12] : memref<16x32xbf16, #tpu.memory_space<vmem>>, vector<16x32xbf16>
    %cst_13 = arith.constant dense<0.000000e+00> : vector<16x32xf32>
    %26 = tpu.matmul %24, %25, %cst_13 {dimension_numbers = #tpu.dot_dimension_numbers<[1], [0], [0], [1], [0, 0, 1, 1], [], []>} : vector<16x16xbf16>, vector<16x32xbf16>, vector<16x32xf32> -> vector<16x32xf32>
    %c0_14 = arith.constant 0 : index
    %c0_15 = arith.constant 0 : index
    %27 = vector.load %arg6[%c0_14, %c0_15] : memref<1x32xf32, #tpu.memory_space<vmem>>, vector<1x32xf32>
    %28 = vector.broadcast %27 : vector<1x32xf32> to vector<16x32xf32>
    %29 = arith.addf %26, %28 : vector<16x32xf32>
    %30 = vector.extract_strided_slice %29 {offsets = [0, 0], sizes = [16, 16], strides = [1, 1]} : vector<16x32xf32> to vector<16x16xf32>
    %31 = arith.negf %30 : vector<16x16xf32>
    %32 = math.exp %31 : vector<16x16xf32>
    %cst_16 = arith.constant 1.000000e+00 : f32
    %33 = vector.broadcast %cst_16 : f32 to vector<16x16xf32>
    %34 = arith.addf %33, %32 : vector<16x16xf32>
    %35 = arith.divf %33, %34 : vector<16x16xf32>
    %36 = vector.extract_strided_slice %29 {offsets = [0, 16], sizes = [16, 16], strides = [1, 1]} : vector<16x32xf32> to vector<16x16xf32>
    %cst_17 = arith.constant 0.000000e+00 : f32
    %37 = vector.broadcast %cst_17 : f32 to vector<16x16xf32>
    %38 = arith.maximumf %36, %37 : vector<16x16xf32>
    %39 = arith.mulf %35, %38 : vector<16x16xf32>
    %cst_18 = arith.constant 1.000000e+00 : f32
    %40 = vector.broadcast %cst_18 : f32 to vector<16x16xf32>
    %41 = arith.subf %40, %35 : vector<16x16xf32>
    %42 = arith.mulf %41, %23 : vector<16x16xf32>
    %43 = arith.addf %39, %42 : vector<16x16xf32>
    %c0_19 = arith.constant 0 : index
    %c0_20 = arith.constant 0 : index
    %44 = vector.load %arg7[%c0_19, %c0_20] : memref<16x16xf32, #tpu.memory_space<vmem>>, vector<16x16xf32>
    tpu.vector_store %arg7[%c0_19, %c0_20], %43 {strides = array<i32>} : memref<16x16xf32, #tpu.memory_space<vmem>>, vector<16x16xf32>,
    return
  }
  func.func @transform_0(%arg0: i32) -> (i32, i32) {
    %c0_i32 = arith.constant 0 : i32
    %c0_i32_0 = arith.constant 0 : i32
    return %arg0, %c0_i32 : i32, i32
  }
  func.func @transform_1(%arg0: i32) -> (i32, i32) {
    %c0_i32 = arith.constant 0 : i32
    %c0_i32_0 = arith.constant 0 : i32
    %c0_i32_1 = arith.constant 0 : i32
    return %c0_i32, %c0_i32_0 : i32, i32
  }
  func.func @transform_2(%arg0: i32) -> (i32, i32) {
    %c0_i32 = arith.constant 0 : i32
    %c0_i32_0 = arith.constant 0 : i32
    %c0_i32_1 = arith.constant 0 : i32
    return %c0_i32, %c0_i32_0 : i32, i32
  }
  func.func @transform_3(%arg0: i32) -> (i32, i32) {
    %c0_i32 = arith.constant 0 : i32
    %c0_i32_0 = arith.constant 0 : i32
    %c0_i32_1 = arith.constant 0 : i32
    return %c0_i32, %c0_i32_0 : i32, i32
  }
  func.func @transform_4(%arg0: i32) -> (i32, i32) {
    %c0_i32 = arith.constant 0 : i32
    %c0_i32_0 = arith.constant 0 : i32
    %c0_i32_1 = arith.constant 0 : i32
    return %c0_i32, %c0_i32_0 : i32, i32
  }
  func.func @transform_5(%arg0: i32) -> (i32, i32) {
    %c0_i32 = arith.constant 0 : i32
    %c0_i32_0 = arith.constant 0 : i32
    %c0_i32_1 = arith.constant 0 : i32
    return %c0_i32, %c0_i32_0 : i32, i32
  }
  func.func @transform_6(%arg0: i32) -> (i32, i32) {
    %c0_i32 = arith.constant 0 : i32
    %c0_i32_0 = arith.constant 0 : i32
    return %arg0, %c0_i32 : i32, i32
  }
}

</mosaic_0001>

<llo_original>
// kernel: tpu_custom_call.1
$region0: #{tpu_custom_call.1}
  #allocation0 [shape = 'u32[]', space=smem, size = 0x4, offset = 0x4, fixed_abs, tag = 'smem constant byte address 0x4 - core index']
  #allocation1 [shape = 'u32[144,128]{1,0:T(1,128)}', space=vmem, size = 0x12000, scoped, tag = 'internal scratch']
  %s0 = inlined_call_operand.vmem [shape: f32[16,32], index: 0, kind: input, shape index: {}]
  %s1 = inlined_call_operand.vmem [shape: bf16[32,16], index: 1, kind: input, shape index: {}]
  %s2 = inlined_call_operand.vmem [shape: bf16[16,32], index: 2, kind: input, shape index: {}]
  %s3 = inlined_call_operand.vmem [shape: f32[1,32], index: 3, kind: input, shape index: {}]
  %s4 = inlined_call_operand.hbm [shape: bf16[16,32], index: 4, kind: input, shape index: {}]
  %s5 = inlined_call_operand.vmem [shape: f32[1,32], index: 5, kind: input, shape index: {}]
  %s6 = inlined_call_operand.hbm [shape: f32[16,16], index: 6, kind: output, shape index: {}]
  %s7 = sld [smem:[#allocation0]]
  $region38: #{tpu_custom_call.1} parent=0
    _
  %s9 = ssub.s32 1, %s7
  %s10 = scalar_select 0, %s9, %s7
  $region1: #{tpu_custom_call.1} parent=0
    #allocation2 [shape = 'u8[4096]{0}', space=vmem, size = 0x1000, scoped, tag = 'input window, operand 4, single buffered']
    #allocation3 [shape = 's32[1]{0}', space=sflag, size = 0x4, scoped, tag = 'scoped memory for tpu_custom_call.1']
    #allocation4 [shape = 's32[1]{0}', space=sflag, size = 0x4, scoped, tag = 'scoped memory for tpu_custom_call.1']
    #allocation5 [shape = 'u8[8192]{0}', space=vmem, size = 0x2000, scoped, tag = 'output window, operand 0, single buffered']
    %11 = vsyncpa [#allocation3], 0
    %12 = vsyncpa [#allocation4], 0
    // Predicated region
    $region2: #{tpu_custom_call.1} parent=1 // pred_check
      _
    $region3: #{tpu_custom_call.1} parent=1 // pred_check_branch
      %14 = sbr.rel (0) target = $region5
    $region4: #{tpu_custom_call.1} parent=1 // pred_region
      _
    $region5: #{tpu_custom_call.1} parent=1 // pred_fallthru
      _
    // Predicated region
    $region6: #{tpu_custom_call.1} parent=1 // pred_check
      _
    $region7: #{tpu_custom_call.1} parent=1 // pred_check_branch
      %16 = sbr.rel (0) target = $region9
    $region8: #{tpu_custom_call.1} parent=1 // pred_region
      _
    $region9: #{tpu_custom_call.1} parent=1 // pred_fallthru
      _
    // Predicated region
    $region10: #{tpu_custom_call.1} parent=1 // pred_check
      _
    $region11: #{tpu_custom_call.1} parent=1 // pred_check_branch
      %18 = sbr.rel (0) target = $region13
    $region12: #{tpu_custom_call.1} parent=1 // pred_region
      _
    $region13: #{tpu_custom_call.1} parent=1 // pred_fallthru
      _
    // Predicated region
    $region14: #{tpu_custom_call.1} parent=1 // pred_check
      _
    $region15: #{tpu_custom_call.1} parent=1 // pred_check_branch
      %20 = sbr.rel (0) target = $region17
    $region16: #{tpu_custom_call.1} parent=1 // pred_region
      _
    $region17: #{tpu_custom_call.1} parent=1 // pred_fallthru
      _
    // Predicated region
    $region18: #{tpu_custom_call.1} parent=1 // pred_check
      _
    $region19: #{tpu_custom_call.1} parent=1 // pred_check_branch
      %22 = sbr.rel (0) target = $region21
    $region20: #{tpu_custom_call.1} parent=1 // pred_region
      %s24 = ssub.s32 128, 128
      %25 = vsyncadd [#allocation3], %s24
      %s26 = sshll.u32 [#allocation2], 4
      %s27 = int_to_ptr.vmem [resolvable:$true] %s26
      %32 = dma.hbm_to_vmem [thread:$0]  %s4, 128, %s27, [#allocation3], 64, 64, 4
    $region21: #{tpu_custom_call.1} parent=1 // pred_fallthru
      _
    // Predicated region
    $region22: #{tpu_custom_call.1} parent=1 // pred_check
      _
    $region23: #{tpu_custom_call.1} parent=1 // pred_check_branch
      %34 = sbr.rel (0) target = $region25
    $region24: #{tpu_custom_call.1} parent=1 // pred_region
      _
    $region25: #{tpu_custom_call.1} parent=1 // pred_fallthru
      _
    // Predicated region
    $region26: #{tpu_custom_call.1} parent=1 // pred_check
      _
    $region27: #{tpu_custom_call.1} parent=1 // pred_check_branch
      %36 = sbr.rel (0) target = $region29
    $region28: #{tpu_custom_call.1} parent=1 // pred_region
      %37 = dma.done [#allocation3], 128
    $region29: #{tpu_custom_call.1} parent=1 // pred_fallthru
      _
    %v39 = vld [vmem:[%s0] sm:$0xff]
    %v40 = vld [vmem:[%s0 + $0x8] sm:$0xff]
    %v41 = vpack.c.bf16 %v40, %v39
    %v42 = vld [vmem:[%s1] sm:$0xf]
    %v43 = vld [vmem:[%s1 + $0x4] sm:$0xf]
    %v44 = vld [vmem:[%s1 + $0x8] sm:$0xf]
    %v45 = vld [vmem:[%s1 + $0xc] sm:$0xf]
    %v50 = vunpack.c.l.b16 %v42
    %v51 = vunpack.c.l.b16 %v43
    %v52 = vunpack.c.l.b16 %v44
    %v53 = vunpack.c.l.b16 %v45
    %v54 = vpack.c.b16 %v51, %v50
    %v55 = vpack.c.b16 %v53, %v52
    %vm58 = vcmask 261120
    %v60 = vsel %vm58, %v41, 0
    %62 = vmatprep.subr.bf16.mxu0 0
    %63 = vmatpush1.bf16.msra.mxu0 0
    %64 = vmatprep.subr.bf16.mxu0 0
    %65 = vmatpush1.bf16.msra.mxu0 0
    %66 = vmatprep.subr.bf16.mxu0 0
    %67 = vmatpush1.bf16.msra.mxu0 0
    %68 = vmatprep.subr.bf16.mxu0 0
    %69 = vmatpush1.bf16.msra.mxu0 0
    %70 = vmatprep.subr.bf16.mxu0 0
    %71 = vmatpush1.bf16.msra.mxu0 0
    %72 = vmatprep.subr.bf16.mxu0 0
    %73 = vmatpush1.bf16.msra.mxu0 0
    %74 = vmatprep.subr.bf16.mxu0 0
    %75 = vmatpush1.bf16.msra.mxu0 %v55
    %76 = vmatprep.subr.bf16.mxu0 0
    %77 = vmatpush1.bf16.msra.mxu0 %v54
    %78 = vmatprep.subr.bf16.mxu0 0
    %79 = vmatpush2.bf16.msra.mxu0 0
    %80 = vmatprep.subr.bf16.mxu0 0
    %81 = vmatpush2.bf16.msra.mxu0 0
    %82 = vmatprep.subr.bf16.mxu0 0
    %83 = vmatpush2.bf16.msra.mxu0 0
    %84 = vmatprep.subr.bf16.mxu0 0
    %85 = vmatpush2.bf16.msra.mxu0 0
    %86 = vmatprep.subr.bf16.mxu0 0
    %87 = vmatpush2.bf16.msra.mxu0 0
    %88 = vmatprep.subr.bf16.mxu0 0
    %89 = vmatpush2.bf16.msra.mxu0 0
    %90 = vmatprep.subr.bf16.mxu0 0
    %91 = vmatpush2.bf16.msra.mxu0 0
    %92 = vmatprep.subr.bf16.mxu0 0
    %93 = vmatpush2.bf16.msra.mxu0 0
    %94 = vmatprep.mubr.bf16.mxu0 0
    %95 = vmatmul.mubr.bf16.gmra.mxu0 %v60
    %v96 = vpop.f32.mrf.mxu0
    %v97 = vadd.f32 0.0, %v96
    %v98 = vpop.f32.mrf.mxu0
    %v99 = vpop.f32.mrf.mxu0
    %v100 = vadd.f32 0.0, %v99
    %v101 = vpop.f32.mrf.mxu0
    %102 = vdwg.mxu0
    %v103 = vpack.c.bf16 %v100, %v97
    %v104 = vld [vmem:[%s2] sm:$0xf]
    %v105 = vld [vmem:[%s2 + $0x4] sm:$0xf]
    %v106 = vld [vmem:[%s3] sm:$0x1]
    %v108 = vlaneseq
    %v109 = vshrl.u32 %v108, 7
    %v110 = vsub.s32 0, %v109
    %v111 = vrot.slane %v106, %v110
    %v115 = vunpack.c.l.b16 %v104
    %v116 = vunpack.c.l.b16 %v105
    %v117 = vpack.c.b16 %v116, %v115
    %vm119 = vcmask 130048
    %v121 = vsel %vm119, %v103, 0
    %123 = vmatprep.subr.bf16.mxu0 0
    %124 = vmatpush1.bf16.msra.mxu0 0
    %125 = vmatprep.subr.bf16.mxu0 0
    %126 = vmatpush1.bf16.msra.mxu0 0
    %127 = vmatprep.subr.bf16.mxu0 0
    %128 = vmatpush1.bf16.msra.mxu0 0
    %129 = vmatprep.subr.bf16.mxu0 0
    %130 = vmatpush1.bf16.msra.mxu0 0
    %131 = vmatprep.subr.bf16.mxu0 0
    %132 = vmatpush1.bf16.msra.mxu0 0
    %133 = vmatprep.subr.bf16.mxu0 0
    %134 = vmatpush1.bf16.msra.mxu0 0
    %135 = vmatprep.subr.bf16.mxu0 0
    %136 = vmatpush1.bf16.msra.mxu0 0
    %137 = vmatprep.subr.bf16.mxu0 0
    %138 = vmatpush1.bf16.msra.mxu0 %v117
    %139 = vmatprep.subr.bf16.mxu0 0
    %140 = vmatpush2.bf16.msra.mxu0 0
    %141 = vmatprep.subr.bf16.mxu0 0
    %142 = vmatpush2.bf16.msra.mxu0 0
    %143 = vmatprep.subr.bf16.mxu0 0
    %144 = vmatpush2.bf16.msra.mxu0 0
    %145 = vmatprep.subr.bf16.mxu0 0
    %146 = vmatpush2.bf16.msra.mxu0 0
    %147 = vmatprep.subr.bf16.mxu0 0
    %148 = vmatpush2.bf16.msra.mxu0 0
    %149 = vmatprep.subr.bf16.mxu0 0
    %150 = vmatpush2.bf16.msra.mxu0 0
    %151 = vmatprep.subr.bf16.mxu0 0
    %152 = vmatpush2.bf16.msra.mxu0 0
    %153 = vmatprep.subr.bf16.mxu0 0
    %154 = vmatpush2.bf16.msra.mxu0 0
    %155 = vmatprep.mubr.bf16.mxu0 0
    %156 = vmatmul.mubr.bf16.gmra.mxu0 %v121
    %v157 = vpop.f32.mrf.mxu0
    %v158 = vadd.f32 %v111, %v157
    %v159 = vpop.f32.mrf.mxu0
    %v160 = vpop.f32.mrf.mxu0
    %v161 = vadd.f32 %v111, %v160
    %v162 = vpop.f32.mrf.mxu0
    %163 = vdwg.mxu0
    %v164 = vxor.u32 %v158, 2147483648
    %v165 = vxor.u32 %v161, 2147483648
    %v166 = vmul.f32 %v164, 1.442695
    %v167 = vpow.pop %v166
    %v168 = vmul.f32 %v165, 1.442695
    %v169 = vpow.pop %v168
    %v170 = vadd.f32 %v167, 1.0
    %v171 = vadd.f32 %v169, 1.0
    %v172 = vrcp.pop %v170
    %v173 = vmul.f32 1.0, %v172
    %v174 = vrcp.pop %v171
    %v175 = vmul.f32 1.0, %v174
    %v176 = vmax.f32 %v158, 0.0
    %v177 = vmax.f32 %v161, 0.0
    %180 = vrot.lane.b32.xlu0 %v176, 112
    %v181 = vpop.permute.xlu0 %180
    %182 = vrot.lane.b32.xlu0 %v177, 112
    %v183 = vpop.permute.xlu0 %182
    %v186 = vmul.f32 %v173, %v181
    %v187 = vmul.f32 %v175, %v183
    %v188 = vsub.f32 1.0, %v173
    %v189 = vsub.f32 1.0, %v175
    %v190 = vmul.f32 %v188, %v97
    %v191 = vmul.f32 %v189, %v100
    %v192 = vadd.f32 %v186, %v190
    %v193 = vadd.f32 %v187, %v191
    %v194 = vpack.c.bf16 %v193, %v192
    %v195 = vld [vmem:[#allocation2] sm:$0xf]
    %v196 = vld [vmem:[#allocation2 + $0x4] sm:$0xf]
    %v197 = vld [vmem:[%s5] sm:$0x1]
    %v199 = vlaneseq
    %v200 = vshrl.u32 %v199, 7
    %v201 = vsub.s32 0, %v200
    %v202 = vrot.slane %v197, %v201
    %v206 = vunpack.c.l.b16 %v195
    %v207 = vunpack.c.l.b16 %v196
    %v208 = vpack.c.b16 %v207, %v206
    %v211 = vsel %vm119, %v194, 0
    %213 = vmatprep.subr.bf16.mxu0 0
    %214 = vmatpush1.bf16.msra.mxu0 0
    %215 = vmatprep.subr.bf16.mxu0 0
    %216 = vmatpush1.bf16.msra.mxu0 0
    %217 = vmatprep.subr.bf16.mxu0 0
    %218 = vmatpush1.bf16.msra.mxu0 0
    %219 = vmatprep.subr.bf16.mxu0 0
    %220 = vmatpush1.bf16.msra.mxu0 0
    %221 = vmatprep.subr.bf16.mxu0 0
    %222 = vmatpush1.bf16.msra.mxu0 0
    %223 = vmatprep.subr.bf16.mxu0 0
    %224 = vmatpush1.bf16.msra.mxu0 0
    %225 = vmatprep.subr.bf16.mxu0 0
    %226 = vmatpush1.bf16.msra.mxu0 0
    %227 = vmatprep.subr.bf16.mxu0 0
    %228 = vmatpush1.bf16.msra.mxu0 %v208
    %229 = vmatprep.subr.bf16.mxu0 0
    %230 = vmatpush2.bf16.msra.mxu0 0
    %231 = vmatprep.subr.bf16.mxu0 0
    %232 = vmatpush2.bf16.msra.mxu0 0
    %233 = vmatprep.subr.bf16.mxu0 0
    %234 = vmatpush2.bf16.msra.mxu0 0
    %235 = vmatprep.subr.bf16.mxu0 0
    %236 = vmatpush2.bf16.msra.mxu0 0
    %237 = vmatprep.subr.bf16.mxu0 0
    %238 = vmatpush2.bf16.msra.mxu0 0
    %239 = vmatprep.subr.bf16.mxu0 0
    %240 = vmatpush2.bf16.msra.mxu0 0
    %241 = vmatprep.subr.bf16.mxu0 0
    %242 = vmatpush2.bf16.msra.mxu0 0
    %243 = vmatprep.subr.bf16.mxu0 0
    %244 = vmatpush2.bf16.msra.mxu0 0
    %245 = vmatprep.mubr.bf16.mxu0 0
    %246 = vmatmul.mubr.bf16.gmra.mxu0 %v211
    %v247 = vpop.f32.mrf.mxu0
    %v248 = vadd.f32 %v202, %v247
    %v249 = vpop.f32.mrf.mxu0
    %v250 = vpop.f32.mrf.mxu0
    %v251 = vadd.f32 %v202, %v250
    %v252 = vpop.f32.mrf.mxu0
    %253 = vdwg.mxu0
    %v254 = vxor.u32 %v248, 2147483648
    %v255 = vxor.u32 %v251, 2147483648
    %v256 = vmul.f32 %v254, 1.442695
    %v257 = vpow.pop %v256
    %v258 = vmul.f32 %v255, 1.442695
    %v259 = vpow.pop %v258
    %v260 = vadd.f32 %v257, 1.0
    %v261 = vadd.f32 %v259, 1.0
    %v262 = vrcp.pop %v260
    %v263 = vmul.f32 1.0, %v262
    %v264 = vrcp.pop %v261
    %v265 = vmul.f32 1.0, %v264
    %v266 = vmax.f32 %v248, 0.0
    %v267 = vmax.f32 %v251, 0.0
    %270 = vrot.lane.b32.xlu0 %v266, 112
    %v271 = vpop.permute.xlu0 %270
    %272 = vrot.lane.b32.xlu0 %v267, 112
    %v273 = vpop.permute.xlu0 %272
    %v276 = vmul.f32 %v263, %v271
    %v277 = vmul.f32 %v265, %v273
    %v278 = vsub.f32 1.0, %v263
    %v279 = vsub.f32 1.0, %v265
    %v280 = vmul.f32 %v278, %v192
    %v281 = vmul.f32 %v279, %v193
    %v282 = vadd.f32 %v276, %v280
    %v283 = vadd.f32 %v277, %v281
    %284 = vst.msk [vmem:[#allocation5] sm:$0xff] %vm119, %v282
    %285 = vst.msk [vmem:[#allocation5 + $0x8] sm:$0xff] %vm119, %v283
    // Predicated region
    $region30: #{tpu_custom_call.1} parent=1 // pred_check
      _
    $region31: #{tpu_custom_call.1} parent=1 // pred_check_branch
      %287 = sbr.rel (0) target = $region33
    $region32: #{tpu_custom_call.1} parent=1 // pred_region
      %s289 = ssub.s32 256, 256
      %290 = vsyncadd [#allocation4], %s289
      %s291 = sshll.u32 [#allocation5], 4
      %s292 = int_to_ptr.vmem [resolvable:$true] %s291
      %297 = dma.vmem_to_hbm [thread:$0]  %s292, 256, %s6, [#allocation4], 128, 128, 8
    $region33: #{tpu_custom_call.1} parent=1 // pred_fallthru
      _
    // Predicated region
    $region34: #{tpu_custom_call.1} parent=1 // pred_check
      _
    $region35: #{tpu_custom_call.1} parent=1 // pred_check_branch
      %299 = sbr.rel (0) target = $region37
    $region36: #{tpu_custom_call.1} parent=1 // pred_region
      %300 = dma.done [#allocation4], 256
    $region37: #{tpu_custom_call.1} parent=1 // pred_fallthru
      _
    %301 = vsyncpa [#allocation3], 1
    %302 = vsyncpa [#allocation4], 1

</llo_original>
